<compile_context>
chip_gen: v5e
topology: v5e:2x2
jax: 0.10.0
libtpu: 0.0.40
codegen_flags: <defaults>
</compile_context>

<pallas_src>
import functools

import jax
import jax.numpy as jnp
import numpy as np
from jax import lax
from jax.experimental import pallas as pl
from jax.experimental.pallas import tpu as pltpu


# ------------------------------ Pallas kernel -------------------------------

def _channel_attention_kernel(x_ref, fc1_ref, fc2_ref, o_ref,
                              sum_ref, max_ref, *, hw, hw_tile, needs_mask):
    """One (batch, spatial-tile) grid step.

    x_ref   : (1, C, hw_tile)  activation tile (native dtype)
    fc1_ref : (Cr, C)          first 1x1 conv weight (no bias), f32
    fc2_ref : (C, Cr)          second 1x1 conv weight (no bias), f32
    o_ref   : (1, 1, C)        sigmoid attention map (lane-dense, last tile only)
    sum_ref : (C, 1) VMEM f32  running spatial sum
    max_ref : (C, 1) VMEM f32  running spatial max
    """
    t = pl.program_id(1)

    @pl.when(t == 0)
    def _init():
        sum_ref[...] = jnp.zeros_like(sum_ref)
        max_ref[...] = jnp.full_like(max_ref, -jnp.inf)

    # ---- one-pass pooling over this spatial tile (f32 accumulation) ----
    x = x_ref[0].astype(jnp.float32)                       # (C, hw_tile)
    if needs_mask:
        # cdiv tiling: lanes past HW in the last tile are padding.
        pos = t * hw_tile + lax.broadcasted_iota(jnp.int32, x.shape, 1)
        valid = pos < hw
        xs = jnp.where(valid, x, 0.0)
        xm = jnp.where(valid, x, -jnp.inf)
    else:
        xs = x
        xm = x
    sum_ref[...] += jnp.sum(xs, axis=1, keepdims=True)
    max_ref[...] = jnp.maximum(max_ref[...], jnp.max(xm, axis=1, keepdims=True))

    # ---- shared MLP + sigmoid, once per batch element ----
    @pl.when(t == pl.num_programs(1) - 1)
    def _finalize():
        mean = sum_ref[...] * (1.0 / hw)                    # (C, 1)
        # (C, 2) RHS: column 0 = mean, column 1 = max  -> 2 matmuls, not 4.
        col = lax.broadcasted_iota(jnp.int32, (mean.shape[0], 2), 1)
        p = jnp.where(col == 0, mean, max_ref[...])         # (C, 2)
        h = jnp.maximum(
            jnp.dot(fc1_ref[...], p, preferred_element_type=jnp.float32), 0.0)  # (Cr, 2)
        o = jnp.dot(fc2_ref[...], h, preferred_element_type=jnp.float32)        # (C, 2)
        att = jax.nn.sigmoid(jnp.sum(o, axis=1))            # (C,)  == fc(avg)+fc(max)
        o_ref[0, 0, :] = att.astype(o_ref.dtype)            # lane-dense store


# ------------------------------- wrapper -------------------------------------

def _pick_hw_tile(c, hw, itemsize, budget_bytes=4 << 20):
    """Spatial tile size: full HW if the (C, HW) block fits a ~4 MiB per-buffer
    budget, otherwise the largest multiple of 128 that fits (>= 128)."""
    if c * hw * itemsize <= budget_bytes:
        return hw
    t = (budget_bytes // (c * itemsize)) // 128 * 128
    return max(int(t), 128)


def channel_attention_forward(x, fc1_w, fc2_w):
    """ChannelAttention.forward.

    x      : (N, C, H, W)        any float dtype (streamed as-is, f32 accumulation)
    fc1_w  : (C//16, C, 1, 1)    Conv2d weight, bias=False
    fc2_w  : (C, C//16, 1, 1)    Conv2d weight, bias=False
    returns: (N, C, 1, 1)        sigmoid(fc(avgpool(x)) + fc(maxpool(x))), dtype of x
    """
    N, C, H, W = x.shape
    HW = H * W
    Cr = fc1_w.shape[0]
    fc1 = fc1_w.reshape(Cr, C).astype(jnp.float32)
    fc2 = fc2_w.reshape(C, Cr).astype(jnp.float32)

    x_flat = x.reshape(N, C, HW)                      # free, native dtype
    itemsize = x_flat.dtype.itemsize
    hw_tile = _pick_hw_tile(C, HW, itemsize)
    n_t = pl.cdiv(HW, hw_tile)
    needs_mask = (HW % hw_tile) != 0

    cost = pl.CostEstimate(
        flops=2 * N * C * HW + 8 * N * C * Cr,
        transcendentals=N * C,
        bytes_accessed=N * C * HW * itemsize + (fc1.size + fc2.size) * 4
                       + N * C * itemsize)

    out = pl.pallas_call(
        functools.partial(_channel_attention_kernel,
                          hw=HW, hw_tile=hw_tile, needs_mask=needs_mask),
        out_shape=jax.ShapeDtypeStruct((N, 1, C), x.dtype),
        grid=(N, n_t),
        in_specs=[pl.BlockSpec((1, C, hw_tile), lambda n, t: (n, 0, t)),
                  pl.BlockSpec((Cr, C), lambda n, t: (0, 0)),
                  pl.BlockSpec((C, Cr), lambda n, t: (0, 0))],
        out_specs=pl.BlockSpec((1, 1, C), lambda n, t: (n, 0, 0)),
        scratch_shapes=[pltpu.VMEM((C, 1), jnp.float32),
                        pltpu.VMEM((C, 1), jnp.float32)],
        compiler_params=pltpu.CompilerParams(
            dimension_semantics=("parallel", "arbitrary"),
            vmem_limit_bytes=32 << 20),
        cost_estimate=cost,
    )(x_flat, fc1, fc2)

    return out.reshape(N, C, 1, 1)


# ------------------------- pure-JAX reference (check) ------------------------

def ref_channel_attention(x, fc1_w, fc2_w):
    def conv1x1(v, w):
        return lax.conv_general_dilated(
            v, w, window_strides=(1, 1), padding=[(0, 0), (0, 0)],
            dimension_numbers=('NCHW', 'OIHW', 'NCHW'))

    avg = x.mean(axis=(2, 3), keepdims=True)
    mx = x.max(axis=(2, 3), keepdims=True)
    fc = lambda p: conv1x1(jax.nn.relu(conv1x1(p, fc1_w)), fc2_w)
    return jax.nn.sigmoid(fc(avg) + fc(mx))


# ----------------------------------- main ------------------------------------

if __name__ == "__main__":
    # in_planes must be >= 16 because the module hardcodes in_planes // 16.
    N, C, H, W = 2, 32, 16, 16
    Cr = C // 16

    key = jax.random.PRNGKey(0)
    k1, k2, k3 = jax.random.split(key, 3)
    x = jax.random.normal(k1, (N, C, H, W), jnp.float32)
    fc1_w = 0.2 * jax.random.normal(k2, (Cr, C, 1, 1), jnp.float32)
    fc2_w = 0.2 * jax.random.normal(k3, (C, Cr, 1, 1), jnp.float32)

    out = jax.jit(channel_attention_forward)(x, fc1_w, fc2_w)
    out = jax.block_until_ready(out)

    ref = ref_channel_attention(x, fc1_w, fc2_w)
    np.testing.assert_allclose(np.asarray(out), np.asarray(ref),
                               rtol=1e-2, atol=1e-2)
    print("KERNEL_OK")
</pallas_src>

<mosaic_0001>
module attributes {stable_mosaic.version = 11 : i64} {
  func.func @_channel_attention_kernel(%arg0: i32, %arg1: i32, %arg2: memref<1x32x256xf32, #tpu.memory_space<vmem>>, %arg3: memref<2x32xf32, #tpu.memory_space<vmem>>, %arg4: memref<32x2xf32, #tpu.memory_space<vmem>>, %arg5: memref<1x1x32xf32, #tpu.memory_space<vmem>>, %arg6: memref<32x1xf32, #tpu.memory_space<vmem>>, %arg7: memref<32x1xf32, #tpu.memory_space<vmem>>) attributes {dimension_semantics = [#tpu.dimension_semantics<parallel>, #tpu.dimension_semantics<arbitrary>], iteration_bounds = array<i64: 2, 1>, scalar_prefetch = 0 : i64, scratch_operands = 2 : i64, tpu.core_type = #tpu.core_type<tc>, window_params = [{transform_indices = @transform_0, window_bounds = array<i64: 1, 32, 256>}, {pipeline_mode = #tpu.pipeline_mode<synchronous>, transform_indices = @transform_1, window_bounds = array<i64: 2, 32>}, {pipeline_mode = #tpu.pipeline_mode<synchronous>, transform_indices = @transform_2, window_bounds = array<i64: 32, 2>}, {transform_indices = @transform_3, window_bounds = array<i64: 1, 1, 32>}]} {
    %c0_i32 = arith.constant 0 : i32
    %0 = arith.cmpi eq, %arg1, %c0_i32 : i32
    %1 = arith.extui %0 : i1 to i32
    %c0_i32_0 = arith.constant 0 : i32
    %2 = arith.cmpi ne, %1, %c0_i32_0 : i32
    scf.if %2 {
      %cst_14 = arith.constant 0.000000e+00 : f32
      %18 = vector.broadcast %cst_14 : f32 to vector<32x1xf32>
      %c0_15 = arith.constant 0 : index
      %c0_16 = arith.constant 0 : index
      %19 = vector.load %arg6[%c0_15, %c0_16] : memref<32x1xf32, #tpu.memory_space<vmem>>, vector<32x1xf32>
      tpu.vector_store %arg6[%c0_15, %c0_16], %18 {strides = array<i32>} : memref<32x1xf32, #tpu.memory_space<vmem>>, vector<32x1xf32>,
      %cst_17 = arith.constant 0xFF800000 : f32
      %20 = vector.broadcast %cst_17 : f32 to vector<32x1xf32>
      %c0_18 = arith.constant 0 : index
      %c0_19 = arith.constant 0 : index
      %21 = vector.load %arg7[%c0_18, %c0_19] : memref<32x1xf32, #tpu.memory_space<vmem>>, vector<32x1xf32>
      tpu.vector_store %arg7[%c0_18, %c0_19], %20 {strides = array<i32>} : memref<32x1xf32, #tpu.memory_space<vmem>>, vector<32x1xf32>,
    } else {
    }
    %c0 = arith.constant 0 : index
    %c0_1 = arith.constant 0 : index
    %c0_2 = arith.constant 0 : index
    %3 = vector.load %arg2[%c0, %c0_1, %c0_2] : memref<1x32x256xf32, #tpu.memory_space<vmem>>, vector<1x32x256xf32>
    %4 = vector.shape_cast %3 : vector<1x32x256xf32> to vector<32x256xf32>
    %c0_3 = arith.constant 0 : index
    %c0_4 = arith.constant 0 : index
    %5 = vector.load %arg6[%c0_3, %c0_4] : memref<32x1xf32, #tpu.memory_space<vmem>>, vector<32x1xf32>
    %cst = arith.constant dense<0.000000e+00> : vector<32xf32>
    %6 = vector.multi_reduction <add>, %4, %cst [1] : vector<32x256xf32> to vector<32xf32>
    %7 = vector.shape_cast %6 : vector<32xf32> to vector<32x1xf32>
    %8 = arith.addf %5, %7 : vector<32x1xf32>
    %c0_5 = arith.constant 0 : index
    %c0_6 = arith.constant 0 : index
    %9 = vector.load %arg6[%c0_5, %c0_6] : memref<32x1xf32, #tpu.memory_space<vmem>>, vector<32x1xf32>
    tpu.vector_store %arg6[%c0_5, %c0_6], %8 {strides = array<i32>} : memref<32x1xf32, #tpu.memory_space<vmem>>, vector<32x1xf32>,
    %c0_7 = arith.constant 0 : index
    %c0_8 = arith.constant 0 : index
    %10 = vector.load %arg7[%c0_7, %c0_8] : memref<32x1xf32, #tpu.memory_space<vmem>>, vector<32x1xf32>
    %cst_9 = arith.constant dense<0xFF800000> : vector<32xf32>
    %11 = vector.multi_reduction <maximumf>, %4, %cst_9 [1] : vector<32x256xf32> to vector<32xf32>
    %12 = vector.shape_cast %11 : vector<32xf32> to vector<32x1xf32>
    %13 = arith.maximumf %10, %12 : vector<32x1xf32>
    %c0_10 = arith.constant 0 : index
    %c0_11 = arith.constant 0 : index
    %14 = vector.load %arg7[%c0_10, %c0_11] : memref<32x1xf32, #tpu.memory_space<vmem>>, vector<32x1xf32>
    tpu.vector_store %arg7[%c0_10, %c0_11], %13 {strides = array<i32>} : memref<32x1xf32, #tpu.memory_space<vmem>>, vector<32x1xf32>,
    %c0_i32_12 = arith.constant 0 : i32
    %15 = arith.cmpi eq, %arg1, %c0_i32_12 : i32
    %16 = arith.extui %15 : i1 to i32
    %c0_i32_13 = arith.constant 0 : i32
    %17 = arith.cmpi ne, %16, %c0_i32_13 : i32
    scf.if %17 {
      %c0_14 = arith.constant 0 : index
      %c0_15 = arith.constant 0 : index
      %18 = vector.load %arg6[%c0_14, %c0_15] : memref<32x1xf32, #tpu.memory_space<vmem>>, vector<32x1xf32>
      %cst_16 = arith.constant 3.906250e-03 : f32
      %19 = vector.broadcast %cst_16 : f32 to vector<32x1xf32>
      %20 = arith.mulf %18, %19 : vector<32x1xf32>
      %21 = tpu.iota {dimensions = array<i32: 1>} : vector<32x2xi32>
      %c0_i32_17 = arith.constant 0 : i32
      %22 = vector.broadcast %c0_i32_17 : i32 to vector<32x2xi32>
      %23 = arith.cmpi eq, %21, %22 : vector<32x2xi32>
      %c0_18 = arith.constant 0 : index
      %c0_19 = arith.constant 0 : index
      %24 = vector.load %arg7[%c0_18, %c0_19] : memref<32x1xf32, #tpu.memory_space<vmem>>, vector<32x1xf32>
      %25 = vector.shape_cast %20 : vector<32x1xf32> to vector<32x1xf32>
      %26 = vector.broadcast %25 : vector<32x1xf32> to vector<32x2xf32>
      %27 = vector.shape_cast %24 : vector<32x1xf32> to vector<32x1xf32>
      %28 = vector.broadcast %27 : vector<32x1xf32> to vector<32x2xf32>
      %29 = arith.select %23, %26, %28 : vector<32x2xi1>, vector<32x2xf32>
      %c0_20 = arith.constant 0 : index
      %c0_21 = arith.constant 0 : index
      %30 = vector.load %arg3[%c0_20, %c0_21] : memref<2x32xf32, #tpu.memory_space<vmem>>, vector<2x32xf32>
      %cst_22 = arith.constant dense<0.000000e+00> : vector<2x2xf32>
      %31 = tpu.matmul %30, %29, %cst_22 {dimension_numbers = #tpu.dot_dimension_numbers<[1], [0], [0], [1], [0, 0, 1, 1], [], []>} : vector<2x32xf32>, vector<32x2xf32>, vector<2x2xf32> -> vector<2x2xf32>
      %cst_23 = arith.constant 0.000000e+00 : f32
      %32 = vector.broadcast %cst_23 : f32 to vector<2x2xf32>
      %33 = arith.maximumf %31, %32 : vector<2x2xf32>
      %c0_24 = arith.constant 0 : index
      %c0_25 = arith.constant 0 : index
      %34 = vector.load %arg4[%c0_24, %c0_25] : memref<32x2xf32, #tpu.memory_space<vmem>>, vector<32x2xf32>
      %cst_26 = arith.constant dense<0.000000e+00> : vector<32x2xf32>
      %35 = tpu.matmul %34, %33, %cst_26 {dimension_numbers = #tpu.dot_dimension_numbers<[1], [0], [0], [1], [0, 0, 1, 1], [], []>} : vector<32x2xf32>, vector<2x2xf32>, vector<32x2xf32> -> vector<32x2xf32>
      %cst_27 = arith.constant dense<0.000000e+00> : vector<32xf32>
      %36 = vector.multi_reduction <add>, %35, %cst_27 [1] : vector<32x2xf32> to vector<32xf32>
      %37 = arith.negf %36 : vector<32xf32>
      %38 = math.exp %37 : vector<32xf32>
      %cst_28 = arith.constant 1.000000e+00 : f32
      %39 = vector.broadcast %cst_28 : f32 to vector<32xf32>
      %40 = arith.addf %39, %38 : vector<32xf32>
      %41 = arith.divf %39, %40 : vector<32xf32>
      %c0_29 = arith.constant 0 : index
      %c0_30 = arith.constant 0 : index
      %c0_31 = arith.constant 0 : index
      %42 = vector.load %arg5[%c0_29, %c0_30, %c0_31] : memref<1x1x32xf32, #tpu.memory_space<vmem>>, vector<1x1x32xf32>
      %43 = vector.shape_cast %42 : vector<1x1x32xf32> to vector<32xf32>
      %44 = vector.shape_cast %41 : vector<32xf32> to vector<1x1x32xf32>
      tpu.vector_store %arg5[%c0_29, %c0_30, %c0_31], %44 {strides = array<i32>} : memref<1x1x32xf32, #tpu.memory_space<vmem>>, vector<1x1x32xf32>,
    } else {
    }
    return
  }
  func.func @transform_0(%arg0: i32, %arg1: i32) -> (i32, i32, i32) {
    %c0_i32 = arith.constant 0 : i32
    %c0_i32_0 = arith.constant 0 : i32
    return %arg0, %c0_i32, %arg1 : i32, i32, i32
  }
  func.func @transform_1(%arg0: i32, %arg1: i32) -> (i32, i32) {
    %c0_i32 = arith.constant 0 : i32
    %c0_i32_0 = arith.constant 0 : i32
    %c0_i32_1 = arith.constant 0 : i32
    return %c0_i32, %c0_i32_0 : i32, i32
  }
  func.func @transform_2(%arg0: i32, %arg1: i32) -> (i32, i32) {
    %c0_i32 = arith.constant 0 : i32
    %c0_i32_0 = arith.constant 0 : i32
    %c0_i32_1 = arith.constant 0 : i32
    return %c0_i32, %c0_i32_0 : i32, i32
  }
  func.func @transform_3(%arg0: i32, %arg1: i32) -> (i32, i32, i32) {
    %c0_i32 = arith.constant 0 : i32
    %c0_i32_0 = arith.constant 0 : i32
    %c0_i32_1 = arith.constant 0 : i32
    return %arg0, %c0_i32, %c0_i32_0 : i32, i32, i32
  }
}

</mosaic_0001>

<llo_original>
// kernel: channel_attention_forward.1
$region0: #{channel_attention_forward.1}
  #allocation0 [shape = 'u32[]', space=smem, size = 0x4, offset = 0x4, fixed_abs, tag = 'smem constant byte address 0x4 - core index']
  #allocation1 [shape = 'u32[72,128]{1,0:T(1,128)}', space=vmem, size = 0x9000, scoped, tag = 'internal scratch']
  #allocation2 [shape = 'f32[32,1]{1,0:T(8,128)}', space=vmem, size = 0x4000, scoped, tag = 'scratch operand']
  #allocation3 [shape = 'f32[32,1]{1,0:T(8,128)}', space=vmem, size = 0x4000, scoped, tag = 'scratch operand']
  %s0 = inlined_call_operand.vmem [shape: f32[2,32,256], index: 0, kind: input, shape index: {}]
  %s1 = inlined_call_operand.vmem [shape: f32[2,32], index: 1, kind: input, shape index: {}]
  %s2 = inlined_call_operand.vmem [shape: f32[32,2], index: 2, kind: input, shape index: {}]
  %s3 = inlined_call_operand.hbm [shape: f32[2,1,32], index: 3, kind: output, shape index: {}]
  %s4 = sld [smem:[#allocation0]]
  $region53: #{channel_attention_forward.1} parent=0
    _
  %s6 = ssub.s32 1, %s4
  %s7 = scalar_select 0, %s6, %s4
  $region1: #{channel_attention_forward.1} parent=0
    #allocation4 [shape = 'u8[1024]{0}', space=vmem, size = 0x400, scoped, tag = 'output window, operand 0']
    #allocation5 [shape = 's32[2]{0}', space=sflag, size = 0x8, scoped, tag = 'scoped memory for channel_attention_forward.1']
    %8 = vsyncpa [#allocation5], 0
    %s9 = scalar_lea.sflag [#allocation5], 1
    %10 = vsyncpa %s9, 0
    loop: start=0, step=1, limit=4
    $region2: #{channel_attention_forward.1} parent=1 // loop_pre_header
      _
    $region3: #{channel_attention_forward.1} parent=1 // loop_header
      %s12 = sphi 0, %s16
      %p13 = scmp.ge.s32.totalorder %s12, 4
      %s19 = sphi 0, %s31
      %s20 = sphi 0, %s27
      %s21 = sphi 0, %s19
      %s22 = sphi 0, %s20
      %s23 = sphi 0, %s21
      %s24 = sphi 0, %s22
      %s36 = sphi 0, %s38
      %s39 = sphi 0, %s36
      %s40 = sphi 0, %s39
      %s56 = sphi 0, %s40
      %s60 = sphi 0, %s60
      %s62 = sphi 0, %s60
      %s63 = sphi 0, %s62
      %s77 = sphi 0, %s63
      %s81 = sphi 0, %s81
      %s83 = sphi 0, %s81
      %s84 = sphi 0, %s83
      %s98 = sphi 0, %s84
      %s104 = sphi 0, %s106
      %s107 = sphi 0, %s104
      %s108 = sphi 0, %s107
      %s124 = sphi 0, %s108
    $region4: #{channel_attention_forward.1} parent=1 // loop_header_branch
      %15 = sbr.rel (%p13) target = $region8
    $region5: #{channel_attention_forward.1} parent=1 // loop_body
      %s17 = ssub.s32 %s12, 1
      %s18 = ssub.s32 %s12, 2
      %s25 = sadd.s32 1, %s20
      %p26 = scmp.ge.s32.totalorder %s25, 1
      %s27 = scalar_select %p26, 0, %s25
      %s28 = sadd.s32 1, %s19
      %s29 = scalar_select %p26, %s28, %s19
      %p30 = scmp.ge.s32.totalorder %s29, 2
      %s31 = scalar_select %p30, 0, %s29
      %s32 = ssub.s32 %s19, %s31
      %s33 = ssub.s32 %s20, %s27
      %s34 = sor.u32 %s32, %s33
      %p35 = scmp.eq.s32.totalorder %s34, 0
      %s37 = sadd.s32 %s36, 1
      %s38 = scalar_select %p35, %s36, %s37
      %p41 = pneg %p35
      %p42 = scmp.eq.s32.totalorder %s12, 1
      %p43 = por %p41, %p42
      %p44 = scmp.ne.s32.totalorder %s36, %s39
      %p45 = scmp.eq.s32.totalorder %s12, 0
      %p46 = por %p44, %p45
      %p47 = scmp.ne.s32.totalorder %s36, %s39
      %p48 = scmp.eq.s32.totalorder %s17, 1
      %p49 = por %p47, %p48
      %p50 = scmp.ne.s32.totalorder %s39, %s40
      %p51 = scmp.eq.s32.totalorder %s17, 0
      %p52 = por %p50, %p51
      %p53 = scmp.ne.s32.totalorder %s39, %s40
      %p54 = scmp.eq.s32.totalorder %s18, 1
      %p55 = por %p53, %p54
      %p57 = scmp.ne.s32.totalorder %s40, %s56
      %p58 = scmp.eq.s32.totalorder %s18, 0
      %p59 = por %p57, %p58
      %s61 = sadd.s32 %s60, 1
      %p64 = scmp.eq.s32.totalorder %s12, 1
      %p65 = scmp.ne.s32.totalorder %s60, %s62
      %p66 = scmp.eq.s32.totalorder %s12, 0
      %p67 = por %p65, %p66
      %p68 = scmp.ne.s32.totalorder %s60, %s62
      %p69 = scmp.eq.s32.totalorder %s17, 1
      %p70 = por %p68, %p69
      %p71 = scmp.ne.s32.totalorder %s62, %s63
      %p72 = scmp.eq.s32.totalorder %s17, 0
      %p73 = por %p71, %p72
      %p74 = scmp.ne.s32.totalorder %s62, %s63
      %p75 = scmp.eq.s32.totalorder %s18, 1
      %p76 = por %p74, %p75
      %p78 = scmp.ne.s32.totalorder %s63, %s77
      %p79 = scmp.eq.s32.totalorder %s18, 0
      %p80 = por %p78, %p79
      %s82 = sadd.s32 %s81, 1
      %p85 = scmp.eq.s32.totalorder %s12, 1
      %p86 = scmp.ne.s32.totalorder %s81, %s83
      %p87 = scmp.eq.s32.totalorder %s12, 0
      %p88 = por %p86, %p87
      %p89 = scmp.ne.s32.totalorder %s81, %s83
      %p90 = scmp.eq.s32.totalorder %s17, 1
      %p91 = por %p89, %p90
      %p92 = scmp.ne.s32.totalorder %s83, %s84
      %p93 = scmp.eq.s32.totalorder %s17, 0
      %p94 = por %p92, %p93
      %p95 = scmp.ne.s32.totalorder %s83, %s84
      %p96 = scmp.eq.s32.totalorder %s18, 1
      %p97 = por %p95, %p96
      %p99 = scmp.ne.s32.totalorder %s84, %s98
      %p100 = scmp.eq.s32.totalorder %s18, 0
      %p101 = por %p99, %p100
      %s102 = ssub.s32 %s19, %s31
      %p103 = scmp.eq.s32.totalorder %s102, 0
      %s105 = sadd.s32 %s104, 1
      %s106 = scalar_select %p103, %s104, %s105
      %p109 = pneg %p103
      %p110 = scmp.eq.s32.totalorder %s12, 1
      %p111 = por %p109, %p110
      %p112 = scmp.ne.s32.totalorder %s104, %s107
      %p113 = scmp.eq.s32.totalorder %s12, 0
      %p114 = por %p112, %p113
      %p115 = scmp.ne.s32.totalorder %s104, %s107
      %p116 = scmp.eq.s32.totalorder %s17, 1
      %p117 = por %p115, %p116
      %p118 = scmp.ne.s32.totalorder %s107, %s108
      %p119 = scmp.eq.s32.totalorder %s17, 0
      %p120 = por %p118, %p119
      %p121 = scmp.ne.s32.totalorder %s107, %s108
      %p122 = scmp.eq.s32.totalorder %s18, 1
      %p123 = por %p121, %p122
      %p125 = scmp.ne.s32.totalorder %s108, %s124
      %p126 = scmp.eq.s32.totalorder %s18, 0
      %p127 = por %p125, %p126
      %p128 = scmp.le.s32.totalorder 1, %s12
      %p129 = scmp.lt.s32.totalorder %s12, 3
      %p130 = pnand %p128, %p129
      %p131 = pneg %p130
      // Predicated region
      $region9: #{channel_attention_forward.1} parent=5 // pred_check
        _
      $region10: #{channel_attention_forward.1} parent=5 // pred_check_branch
        %133 = sbr.rel (%p130) target = $region12
      $region11: #{channel_attention_forward.1} parent=5 // pred_region
        %s134 = ssub.s32 %s12, 1
        // Predicated region
        $region13: #{channel_attention_forward.1} parent=11 // pred_check
          %p135 = pneg %p73
        $region14: #{channel_attention_forward.1} parent=11 // pred_check_branch
          %137 = sbr.rel (%p135) target = $region16
        $region15: #{channel_attention_forward.1} parent=11 // pred_region
          _
        $region16: #{channel_attention_forward.1} parent=11 // pred_fallthru
          _
        // Predicated region
        $region17: #{channel_attention_forward.1} parent=11 // pred_check
          %p138 = pneg %p94
        $region18: #{channel_attention_forward.1} parent=11 // pred_check_branch
          %140 = sbr.rel (%p138) target = $region20
        $region19: #{channel_attention_forward.1} parent=11 // pred_region
          _
        $region20: #{channel_attention_forward.1} parent=11 // pred_fallthru
          _
      $region12: #{channel_attention_forward.1} parent=5 // pred_fallthru
        _
      %p141 = scmp.lt.s32.totalorder %s12, 2
      // Predicated region
      $region21: #{channel_attention_forward.1} parent=5 // pred_check
        %p142 = pneg %p141
      $region22: #{channel_attention_forward.1} parent=5 // pred_check_branch
        %144 = sbr.rel (%p142) target = $region24
      $region23: #{channel_attention_forward.1} parent=5 // pred_region
        // Predicated region
        $region25: #{channel_attention_forward.1} parent=23 // pred_check
          %p145 = pneg %p46
        $region26: #{channel_attention_forward.1} parent=23 // pred_check_branch
          %147 = sbr.rel (%p145) target = $region28
        $region27: #{channel_attention_forward.1} parent=23 // pred_region
          %s148 = smul.u32 2, %s20
          %p149 = scmp.lt.s32.totalorder %s19, 1
          %s150 = scalar_select %p149, %s19, 1
          %p151 = scmp.lt.s32.totalorder %s148, 1
          %s152 = scalar_select %p151, %s148, 1
          %s153 = smul.addr %s150, 8
          %s154 = sadd.s32 %s152, %s153
          %s155 = smul.addr %s154, 8
          %s156 = scalar_lea.vmem %s0, %s155
          %s157 = smul.u32 2, %s20
        $region28: #{channel_attention_forward.1} parent=23 // pred_fallthru
          _
      $region24: #{channel_attention_forward.1} parent=5 // pred_fallthru
        _
      %p158 = scmp.le.s32.totalorder 1, %s12
      %p159 = scmp.lt.s32.totalorder %s12, 3
      %p160 = pnand %p158, %p159
      %p161 = pneg %p160
      // Predicated region
      $region29: #{channel_attention_forward.1} parent=5 // pred_check
        _
      $region30: #{channel_attention_forward.1} parent=5 // pred_check_branch
        %163 = sbr.rel (%p160) target = $region32
      $region31: #{channel_attention_forward.1} parent=5 // pred_region
        %s164 = ssub.s32 %s12, 1
        %s165 = smul.u32 2, %s22
        %p166 = scmp.lt.s32.totalorder %s21, 1
        %s167 = scalar_select %p166, %s21, 1
        %p168 = scmp.lt.s32.totalorder %s165, 1
        %s169 = scalar_select %p168, %s165, 1
        %s170 = smul.addr %s167, 8
        %s171 = sadd.s32 %s169, %s170
        %s172 = smul.addr %s171, 8
        %s173 = scalar_lea.vmem %s0, %s172
        %p174 = pneg %p52
        %p175 = pneg %p49
        %p176 = pneg %p73
        %p177 = pneg %p70
        %p178 = pneg %p94
        %p179 = pneg %p91
        %p180 = pneg %p120
        %p181 = pneg %p117
        %s182 = sand.u32 %s107, 1
        %s183 = scalar_lea.sflag [#allocation5], %s182
        %s184 = sand.u32 %s107, 1
        %s185 = scalar_lea.vmem [#allocation4], %s184
        %s186 = smul.u32 2, %s22
        %p187 = scmp.lt.s32.totalorder %s21, 1
        %s188 = scalar_select %p187, %s21, 1
        %p189 = scmp.lt.s32.totalorder %s186, 1
        %s190 = scalar_select %p189, %s186, 1
        %s191 = smul.addr %s188, 8
        %s192 = sadd.s32 %s190, %s191
        %s193 = smul.addr %s192, 8
        %s194 = scalar_lea.vmem %s0, %s193
        %s195 = smul.u32 2, %s22
        %p196 = scmp.eq.s32.totalorder %s22, 0
        // Predicated region
        $region33: #{channel_attention_forward.1} parent=31 // pred_check
          %p197 = pneg %p196
        $region34: #{channel_attention_forward.1} parent=31 // pred_check_branch
          %199 = sbr.rel (%p197) target = $region36
        $region35: #{channel_attention_forward.1} parent=31 // pred_region
          %vm200 = vcmask 7168
          %201 = vst.msk [vmem:[#allocation2] sm:$0xff] %vm200, 0.0
          %202 = vst.msk [vmem:[#allocation2 + $0x8] sm:$0xff] %vm200, 0.0
          %203 = vst.msk [vmem:[#allocation2 + $0x10] sm:$0xff] %vm200, 0.0
          %204 = vst.msk [vmem:[#allocation2 + $0x18] sm:$0xff] %vm200, 0.0
          %205 = vst.msk [vmem:[#allocation3] sm:$0xff] %vm200, -inf
          %206 = vst.msk [vmem:[#allocation3 + $0x8] sm:$0xff] %vm200, -inf
          %207 = vst.msk [vmem:[#allocation3 + $0x10] sm:$0xff] %vm200, -inf
          %208 = vst.msk [vmem:[#allocation3 + $0x18] sm:$0xff] %vm200, -inf
        $region36: #{channel_attention_forward.1} parent=31 // pred_fallthru
          _
        %v209 = vld [vmem:[%s194] sm:$0xff]
        %v210 = vld [vmem:[%s194 + $0x8] sm:$0xff]
        %v211 = vld [vmem:[%s194 + $0x10] sm:$0xff]
        %v212 = vld [vmem:[%s194 + $0x18] sm:$0xff]
        %v213 = vld [vmem:[%s194 + $0x20] sm:$0xff]
        %v214 = vld [vmem:[%s194 + $0x28] sm:$0xff]
        %v215 = vld [vmem:[%s194 + $0x30] sm:$0xff]
        %v216 = vld [vmem:[%s194 + $0x38] sm:$0xff]
        %v217 = vld [vmem:[#allocation2] sm:$0xff]
        %v218 = vld [vmem:[#allocation2 + $0x8] sm:$0xff]
        %v219 = vld [vmem:[#allocation2 + $0x10] sm:$0xff]
        %v220 = vld [vmem:[#allocation2 + $0x18] sm:$0xff]
        %v221 = vadd.f32 %v209, %v210
        %222 = vadd.xlane.f32.xlu0 %v221
        %v223 = vpop.xlane.xlu0 %222
        %v224 = vadd.f32 %v211, %v212
        %225 = vadd.xlane.f32.xlu0 %v224
        %v226 = vpop.xlane.xlu0 %225
        %v227 = vadd.f32 %v213, %v214
        %228 = vadd.xlane.f32.xlu0 %v227
        %v229 = vpop.xlane.xlu0 %228
        %v230 = vadd.f32 %v215, %v216
        %231 = vadd.xlane.f32.xlu0 %v230
        %v232 = vpop.xlane.xlu0 %231
        %v233 = vadd.f32 %v217, %v223
        %v234 = vadd.f32 %v218, %v226
        %v235 = vadd.f32 %v219, %v229
        %v236 = vadd.f32 %v220, %v232
        %vm237 = vcmask 7168
        %238 = vst.msk [vmem:[#allocation2] sm:$0xff] %vm237, %v233
        %239 = vst.msk [vmem:[#allocation2 + $0x8] sm:$0xff] %vm237, %v234
        %240 = vst.msk [vmem:[#allocation2 + $0x10] sm:$0xff] %vm237, %v235
        %241 = vst.msk [vmem:[#allocation2 + $0x18] sm:$0xff] %vm237, %v236
        %v242 = vld [vmem:[#allocation3] sm:$0xff]
        %v243 = vld [vmem:[#allocation3 + $0x8] sm:$0xff]
        %v244 = vld [vmem:[#allocation3 + $0x10] sm:$0xff]
        %v245 = vld [vmem:[#allocation3 + $0x18] sm:$0xff]
        %v246 = vmax.f32 %v209, %v210
        %247 = vmax.xlane.f32.xlu0 %v246
        %v248 = vpop.xlane.xlu0 %247
        %v249 = vmax.f32 %v211, %v212
        %250 = vmax.xlane.f32.xlu0 %v249
        %v251 = vpop.xlane.xlu0 %250
        %v252 = vmax.f32 %v213, %v214
        %253 = vmax.xlane.f32.xlu0 %v252
        %v254 = vpop.xlane.xlu0 %253
        %v255 = vmax.f32 %v215, %v216
        %256 = vmax.xlane.f32.xlu0 %v255
        %v257 = vpop.xlane.xlu0 %256
        %v258 = vmax.f32 %v242, %v248
        %v259 = vmax.f32 %v243, %v251
        %v260 = vmax.f32 %v244, %v254
        %v261 = vmax.f32 %v245, %v257
        %262 = vst.msk [vmem:[#allocation3] sm:$0xff] %vm237, %v258
        %263 = vst.msk [vmem:[#allocation3 + $0x8] sm:$0xff] %vm237, %v259
        %264 = vst.msk [vmem:[#allocation3 + $0x10] sm:$0xff] %vm237, %v260
        %265 = vst.msk [vmem:[#allocation3 + $0x18] sm:$0xff] %vm237, %v261
        // Predicated region
        $region37: #{channel_attention_forward.1} parent=31 // pred_check
          %p266 = pneg %p196
        $region38: #{channel_attention_forward.1} parent=31 // pred_check_branch
          %268 = sbr.rel (%p266) target = $region40
        $region39: #{channel_attention_forward.1} parent=31 // pred_region
          %v269 = vld [vmem:[#allocation2] sm:$0xff]
          %v270 = vld [vmem:[#allocation2 + $0x8] sm:$0xff]
          %v271 = vld [vmem:[#allocation2 + $0x10] sm:$0xff]
          %v272 = vld [vmem:[#allocation2 + $0x18] sm:$0xff]
          %v273 = vmul.f32 %v269, 0.00390625
          %v274 = vmul.f32 %v270, 0.00390625
          %v275 = vmul.f32 %v271, 0.00390625
          %v276 = vmul.f32 %v272, 0.00390625
          %v277 = vlaneseq
          %v278 = vand.u32 %v277, 127
          %vm279 = vcmp.eq.s32.totalorder %v278, 0
          %v280 = vld [vmem:[#allocation3] sm:$0xff]
          %v281 = vld [vmem:[#allocation3 + $0x8] sm:$0xff]
          %v282 = vld [vmem:[#allocation3 + $0x10] sm:$0xff]
          %v283 = vld [vmem:[#allocation3 + $0x18] sm:$0xff]
          %285 = vset.pattern.permute.xlu0 0
          %286 = vperm.xlu0 %285, %v273
          %v287 = vpop.permute.xlu0 %286
          %290 = vset.pattern.permute.xlu0 0
          %291 = vperm.xlu0 %290, %v274
          %v292 = vpop.permute.xlu0 %291
          %295 = vset.pattern.permute.xlu0 0
          %296 = vperm.xlu0 %295, %v275
          %v297 = vpop.permute.xlu0 %296
          %300 = vset.pattern.permute.xlu0 0
          %301 = vperm.xlu0 %300, %v276
          %v302 = vpop.permute.xlu0 %301
          %305 = vset.pattern.permute.xlu0 0
          %306 = vperm.xlu0 %305, %v280
          %v307 = vpop.permute.xlu0 %306
          %310 = vset.pattern.permute.xlu0 0
          %311 = vperm.xlu0 %310, %v281
          %v312 = vpop.permute.xlu0 %311
          %315 = vset.pattern.permute.xlu0 0
          %316 = vperm.xlu0 %315, %v282
          %v317 = vpop.permute.xlu0 %316
          %320 = vset.pattern.permute.xlu0 0
          %321 = vperm.xlu0 %320, %v283
          %v322 = vpop.permute.xlu0 %321
          %v324 = vsel %vm279, %v287, %v307
          %v325 = vsel %vm279, %v292, %v312
          %v326 = vsel %vm279, %v297, %v317
          %v327 = vsel %vm279, %v302, %v322
          %v328 = vld [vmem:[%s1] sm:$0x3]
          %vm329 = vcmask 261120
          %v331 = vsel %vm329, %v328, 0
          %333 = vmatpush.msra.mxu0 0.0
          %334 = vmatpush.msra.mxu0 0.0
          %335 = vmatpush.msra.mxu0 0.0
          %336 = vmatpush.msra.mxu0 0.0
          %337 = vmatpush.msra.mxu0 0.0
          %338 = vmatpush.msra.mxu0 0.0
          %339 = vmatpush.msra.mxu0 0.0
          %340 = vmatpush.msra.mxu0 0.0
          %341 = vmatpush.msra.mxu0 0.0
          %342 = vmatpush.msra.mxu0 0.0
          %343 = vmatpush.msra.mxu0 0.0
          %344 = vmatpush.msra.mxu0 0.0
          %345 = vmatpush.msra.mxu0 %v327
          %346 = vmatpush.msra.mxu0 %v326
          %347 = vmatpush.msra.mxu0 %v325
          %348 = vmatpush.msra.mxu0 %v324
          %349 = vmatmul.f32.gmra.mxu0 %v331
          %v350 = vpop.f32.mrf.mxu0
          %v351 = vadd.f32 0.0, %v350
          %352 = vdwg.mxu0
          %v353 = vmax.f32 %v351, 0.0
          %v354 = vld [vmem:[%s2] sm:$0xff]
          %v355 = vld [vmem:[%s2 + $0x8] sm:$0xff]
          %v356 = vld [vmem:[%s2 + $0x10] sm:$0xff]
          %v357 = vld [vmem:[%s2 + $0x18] sm:$0xff]
          %vm358 = vcmask 15360
          %v360 = vsel %vm358, %v354, 0
          %v363 = vsel %vm358, %v355, 0
          %v366 = vsel %vm358, %v356, 0
          %v369 = vsel %vm358, %v357, 0
          %vm371 = vcmask 1041408
          %v373 = vsel %vm371, %v353, 0
          %375 = vmatpush.msra.mxu0 0.0
          %376 = vmatpush.msra.mxu0 0.0
          %377 = vmatpush.msra.mxu0 0.0
          %378 = vmatpush.msra.mxu0 0.0
          %379 = vmatpush.msra.mxu0 0.0
          %380 = vmatpush.msra.mxu0 0.0
          %381 = vmatpush.msra.mxu0 0.0
          %382 = vmatpush.msra.mxu0 0.0
          %383 = vmatpush.msra.mxu0 0.0
          %384 = vmatpush.msra.mxu0 0.0
          %385 = vmatpush.msra.mxu0 0.0
          %386 = vmatpush.msra.mxu0 0.0
          %387 = vmatpush.msra.mxu0 0.0
          %388 = vmatpush.msra.mxu0 0.0
          %389 = vmatpush.msra.mxu0 0.0
          %390 = vmatpush.msra.mxu0 %v373
          %391 = vmatmul.f32.gmra.mxu0 %v360
          %v392 = vpop.f32.mrf.mxu0
          %v393 = vadd.f32 0.0, %v392
          %394 = vmatmul.f32.gmra.mxu0 %v363
          %v395 = vpop.f32.mrf.mxu0
          %v396 = vadd.f32 0.0, %v395
          %397 = vmatmul.f32.gmra.mxu0 %v366
          %v398 = vpop.f32.mrf.mxu0
          %v399 = vadd.f32 0.0, %v398
          %400 = vmatmul.f32.gmra.mxu0 %v369
          %v401 = vpop.f32.mrf.mxu0
          %v402 = vadd.f32 0.0, %v401
          %403 = vdwg.mxu0
          %v404 = vsel %vm358, %v393, 0.0
          %405 = vadd.xlane.f32.xlu0 %v404
          %v406 = vpop.xlane.xlu0 %405
          %v407 = vsel %vm358, %v396, 0.0
          %408 = vadd.xlane.f32.xlu0 %v407
          %v409 = vpop.xlane.xlu0 %408
          %v410 = vsel %vm358, %v399, 0.0
          %411 = vadd.xlane.f32.xlu0 %v410
          %v412 = vpop.xlane.xlu0 %411
          %v413 = vsel %vm358, %v402, 0.0
          %414 = vadd.xlane.f32.xlu0 %v413
          %v415 = vpop.xlane.xlu0 %414
          %v416 = vxor.u32 %v406, 2147483648
          %v417 = vxor.u32 %v409, 2147483648
          %v418 = vxor.u32 %v412, 2147483648
          %v419 = vxor.u32 %v415, 2147483648
          %v420 = vmul.f32 %v416, 1.442695
          %v421 = vpow.pop %v420
          %v422 = vmul.f32 %v417, 1.442695
          %v423 = vpow.pop %v422
          %v424 = vmul.f32 %v418, 1.442695
          %v425 = vpow.pop %v424
          %v426 = vmul.f32 %v419, 1.442695
          %v427 = vpow.pop %v426
          %v428 = vadd.f32 %v421, 1.0
          %v429 = vadd.f32 %v423, 1.0
          %v430 = vadd.f32 %v425, 1.0
          %v431 = vadd.f32 %v427, 1.0
          %v432 = vrcp.pop %v428
          %v433 = vmul.f32 %v428, %v432
          %v434 = vsub.f32 1.0, %v433
          %v435 = vmul.f32 %v432, %v434
          %v436 = vadd.f32 %v432, %v435
          %vm437 = vweird.f32 %v428
          %vm438 = vweird.f32 %v432
          %vm439 = vmor %vm437, %vm438
          %v440 = vsel %vm439, %v432, %v436
          %v441 = vand.u32 2147483647, %v428
          %vm442 = vcmp.eq.f32.partialorder %v441, 8.507059e+37
          %v443 = vand.u32 %v428, 2147483648
          %v444 = vor.u32 1.1754944e-38, %v443
          %v445 = vsel %vm442, %v444, %v440
          %v446 = vmul.f32 1.0, %v445
          %v447 = vrcp.pop %v429
          %v448 = vmul.f32 %v429, %v447
          %v449 = vsub.f32 1.0, %v448
          %v450 = vmul.f32 %v447, %v449
          %v451 = vadd.f32 %v447, %v450
          %vm452 = vweird.f32 %v429
          %vm453 = vweird.f32 %v447
          %vm454 = vmor %vm452, %vm453
          %v455 = vsel %vm454, %v447, %v451
          %v456 = vand.u32 2147483647, %v429
          %vm457 = vcmp.eq.f32.partialorder %v456, 8.507059e+37
          %v458 = vand.u32 %v429, 2147483648
          %v459 = vor.u32 1.1754944e-38, %v458
          %v460 = vsel %vm457, %v459, %v455
          %v461 = vmul.f32 1.0, %v460
          %v462 = vrcp.pop %v430
          %v463 = vmul.f32 %v430, %v462
          %v464 = vsub.f32 1.0, %v463
          %v465 = vmul.f32 %v462, %v464
          %v466 = vadd.f32 %v462, %v465
          %vm467 = vweird.f32 %v430
          %vm468 = vweird.f32 %v462
          %vm469 = vmor %vm467, %vm468
          %v470 = vsel %vm469, %v462, %v466
          %v471 = vand.u32 2147483647, %v430
          %vm472 = vcmp.eq.f32.partialorder %v471, 8.507059e+37
          %v473 = vand.u32 %v430, 2147483648
          %v474 = vor.u32 1.1754944e-38, %v473
          %v475 = vsel %vm472, %v474, %v470
          %v476 = vmul.f32 1.0, %v475
          %v477 = vrcp.pop %v431
          %v478 = vmul.f32 %v431, %v477
          %v479 = vsub.f32 1.0, %v478
          %v480 = vmul.f32 %v477, %v479
          %v481 = vadd.f32 %v477, %v480
          %vm482 = vweird.f32 %v431
          %vm483 = vweird.f32 %v477
          %vm484 = vmor %vm482, %vm483
          %v485 = vsel %vm484, %v477, %v481
          %v486 = vand.u32 2147483647, %v431
          %vm487 = vcmp.eq.f32.partialorder %v486, 8.507059e+37
          %v488 = vand.u32 %v431, 2147483648
          %v489 = vor.u32 1.1754944e-38, %v488
          %v490 = vsel %vm487, %v489, %v485
          %v491 = vmul.f32 1.0, %v490
          %v496 = vperm.slane %v446, %v278
          %v497 = vadd.s32 %v278, 4294967288
          %v498 = vperm.slane %v461, %v497
          %vm499 = vcmask 130112
          %v500 = vsel %vm499, %v498, %v496
          %v501 = vadd.s32 %v278, 4294967280
          %v502 = vperm.slane %v476, %v501
          %vm503 = vcmask 195712
          %v504 = vsel %vm503, %v502, %v500
          %v505 = vadd.s32 %v278, 4294967272
          %v506 = vperm.slane %v491, %v505
          %vm507 = vcmask 261312
          %v508 = vsel %vm507, %v506, %v504
          %vm510 = vcmask 253952
          %511 = vst.msk [vmem:[%s185] sm:$0x1] %vm510, %v508
        $region40: #{channel_attention_forward.1} parent=31 // pred_fallthru
          _
        %s512 = sand.u32 %s107, 1
        %s513 = scalar_lea.sflag [#allocation5], %s512
        %s514 = sand.u32 %s107, 1
        %s515 = scalar_lea.vmem [#allocation4], %s514
        // Predicated region
        $region41: #{channel_attention_forward.1} parent=31 // pred_check
          %p516 = pneg %p117
        $region42: #{channel_attention_forward.1} parent=31 // pred_check_branch
          %518 = sbr.rel (%p516) target = $region44
        $region43: #{channel_attention_forward.1} parent=31 // pred_region
          %520 = vsyncadd %s513, 0
          %s521 = scalar_lea.hbm %s3, %s21
          %s523 = sshll.u32 %s515, 4
          %s524 = int_to_ptr.vmem [resolvable:$true] %s523
          %s525 = sshll.u32 %s521, 4
          %s526 = int_to_ptr.hbm [resolvable:$true] %s525
          %528 = dma.vmem_to_hbm [thread:$0]  %s524, 16, %s526, %s513
        $region44: #{channel_attention_forward.1} parent=31 // pred_fallthru
          _
      $region32: #{channel_attention_forward.1} parent=5 // pred_fallthru
        _
      %p529 = scmp.le.s32.totalorder 2, %s12
      // Predicated region
      $region45: #{channel_attention_forward.1} parent=5 // pred_check
        %p530 = pneg %p529
      $region46: #{channel_attention_forward.1} parent=5 // pred_check_branch
        %532 = sbr.rel (%p530) target = $region48
      $region47: #{channel_attention_forward.1} parent=5 // pred_region
        %s533 = ssub.s32 %s12, 2
        // Predicated region
        $region49: #{channel_attention_forward.1} parent=47 // pred_check
          %p534 = pneg %p123
        $region50: #{channel_attention_forward.1} parent=47 // pred_check_branch
          %536 = sbr.rel (%p534) target = $region52
        $region51: #{channel_attention_forward.1} parent=47 // pred_region
          %s537 = sand.u32 %s108, 1
          %s538 = scalar_lea.sflag [#allocation5], %s537
          %s539 = sand.u32 %s108, 1
          %s540 = scalar_lea.vmem [#allocation4], %s539
          %542 = dma.done %s538, 16
        $region52: #{channel_attention_forward.1} parent=47 // pred_fallthru
          _
      $region48: #{channel_attention_forward.1} parent=5 // pred_fallthru
        _
    $region6: #{channel_attention_forward.1} parent=1 // loop_footer
      %s16 = sadd.s32 1, %s12
    $region7: #{channel_attention_forward.1} parent=1 // loop_footer_branch
      %11 = sbr.rel target = $region3
    $region8: #{channel_attention_forward.1} parent=1 // loop_exit
      _
    %543 = vsyncpa [#allocation5], 1
    %s544 = scalar_lea.sflag [#allocation5], 1
    %545 = vsyncpa %s544, 1

</llo_original>
